<compile_context>
chip_gen: v7x
topology: tpu7x:2x2x1
jax: 0.10.0
libtpu: 0.0.40
codegen_flags: <defaults>
</compile_context>

<pallas_src>
import jax
import jax.numpy as jnp
from jax.experimental import pallas as pl
from jax.experimental.pallas import tpu as pltpu

# ----- model hyper-parameters --------------------------------------------------
NR_OF_CARDS = 112
NR_OF_BUCKETS = 16
NR_OF_CARDS_PER_DECK = 8
DENSE_NEURONS = 64
CARD_ENCODING_SIZE = 32
ENCODER_DIM = 32
INPUT_SIZE = NR_OF_CARDS + NR_OF_BUCKETS            # 128 (lane-aligned)

# ----- kernel layout constants --------------------------------------------------
BATCH_TILE = 8                                       # requests per grid step (multiple of 8)

# field-major input slab (NUM_FIELDS, B, 128)
F_DECK, F_RANK, F_REMOVED, F_CARDS = 0, 1, 2, 3
NUM_FIELDS = 4

# field-major output slab (NUM_OUT, B, 128)
O_DRD, O_CD, O_BKT = 0, 1, 2
NUM_OUT = 3

# Packed parameter slab (PARAM_ROWS, 128). Data regions are disjoint, but the
# 128-row windows the kernel slices overlap: every overlapped row only ever
# multiplies activation lanes that are exactly zero (cards lanes 32:128, hidden
# lanes 64:128), so it contributes nothing.
P_WENC = 0                                           # rows   0:128 cols 0:32  encoder W^T
P_W1 = 128                                           # rows 128:160 cols 0:64  dense_1 W^T
P_W2 = P_W1 + CARD_ENCODING_SIZE                     # rows 160:224 cols 0:64  dense_2 W^T
P_WC = P_W2 + DENSE_NEURONS                          # rows 224:288 cols 0:128 classifier W^T
P_BIAS = P_WC + DENSE_NEURONS                        # row 288 = b1, 289 = b2, 290 = bc
PARAM_ROWS = P_WC + INPUT_SIZE                       # 352 (keeps the WC window in-bounds)


# ----------------------------- Pallas kernel ----------------------------------
def clash_royale_kernel(x_ref, bucket_ref, p_ref, o_ref):
    bt = x_ref.shape[1]                              # BATCH_TILE

    # ---- cards MLP + softmax first (depends only on the cards field) so probs
    # can ride the single encoder matmul below.
    bias = p_ref[P_BIAS:P_BIAS + 8, :]               # 1 vreg: rows 0/1/2 = b1/b2/bc
    cards = x_ref[F_CARDS, :, :]                     # (BT,128), lanes 32:128 exact zeros
    h = jnp.maximum(
        jnp.dot(cards, p_ref[P_W1:P_W1 + 128, :],
                preferred_element_type=jnp.float32) + bias[0:1, :], 0.0)
    h = jnp.maximum(
        jnp.dot(h, p_ref[P_W2:P_W2 + 128, :],
                preferred_element_type=jnp.float32) + bias[1:2, :], 0.0)
    logits = jnp.dot(h, p_ref[P_WC:P_WC + 128, :],
                     preferred_element_type=jnp.float32) + bias[2:3, :]
    logits = logits - jnp.max(logits, axis=-1, keepdims=True)
    e = jnp.exp(logits)
    probs = e / jnp.sum(e, axis=-1, keepdims=True)   # exact divide (tolerance headroom)

    # ---- single MXU push for every encoding_layer application ---------------
    stacked = jnp.concatenate(
        [x_ref[F_DECK, :, :], x_ref[F_RANK, :, :], x_ref[F_REMOVED, :, :],
         probs, bucket_ref[...]], axis=0)            # (4*BT + 16, 128), 8-aligned pieces
    enc = jnp.dot(stacked, p_ref[P_WENC:P_WENC + 128, :],
                  preferred_element_type=jnp.float32)   # cols 32:128 are exact zeros

    deck_enc = enc[0 * bt:1 * bt, :]
    rank_enc = enc[1 * bt:2 * bt, :]
    removed_enc = enc[2 * bt:3 * bt, :]
    agg_enc = enc[3 * bt:4 * bt, :]
    bucket_enc = enc[4 * bt:4 * bt + NR_OF_BUCKETS, :]

    # ---- direct, contiguous lane-dense stores (no output concatenate) -------
    o_ref[O_DRD, :, :] = deck_enc - rank_enc          # deck_ranking_diff (valid cols 0:32)
    o_ref[O_CD, :, :] = agg_enc - removed_enc         # cards_diff        (valid cols 0:32)

    # bucket = argmax_k ||bucket_enc_k - deck_enc_b||; sqrt dropped (monotone),
    # first-occurrence tie-break like torch.argmax.
    diff = bucket_enc[None, :, :] - deck_enc[:, None, :]        # (BT,16,128)
    d2 = jnp.sum(diff * diff, axis=-1)                          # (BT,16)
    maxd = jnp.max(d2, axis=-1, keepdims=True)
    iota = jax.lax.broadcasted_iota(jnp.int32, d2.shape, 1)
    cand = jnp.where(d2 >= maxd, iota, jnp.int32(NR_OF_BUCKETS))
    bkt = jnp.min(cand, axis=-1, keepdims=True).astype(jnp.float32)   # (BT,1), value < 16
    o_ref[O_BKT, :, :] = jnp.broadcast_to(bkt, (bt, INPUT_SIZE))


# ------------------------------- wrapper --------------------------------------
def pack_params(p):
    """Pack all weights/biases into one lane-dense (352,128) f32 buffer."""
    P = jnp.zeros((PARAM_ROWS, INPUT_SIZE), jnp.float32)
    P = P.at[P_WENC:P_WENC + INPUT_SIZE, :ENCODER_DIM].set(p["wenc_t"])
    P = P.at[P_W1:P_W1 + CARD_ENCODING_SIZE, :DENSE_NEURONS].set(p["w1_t"])
    P = P.at[P_W2:P_W2 + DENSE_NEURONS, :DENSE_NEURONS].set(p["w2_t"])
    P = P.at[P_WC:P_WC + DENSE_NEURONS, :INPUT_SIZE].set(p["wc_t"])
    P = P.at[P_BIAS + 0, :DENSE_NEURONS].set(p["b1"][0])
    P = P.at[P_BIAS + 1, :DENSE_NEURONS].set(p["b2"][0])
    P = P.at[P_BIAS + 2, :INPUT_SIZE].set(p["bc"][0])
    return P


@jax.jit
def clash_royale_forward(params_packed, deck, rank, cards, removed, bucket):
    """B independent forwards (shared bucket table), B % BATCH_TILE == 0."""
    b = deck.shape[0]
    assert b % BATCH_TILE == 0, "batch must be a multiple of BATCH_TILE"

    # One fused stack instead of per-row dynamic-update-slices into zeros.
    cards_padded = jnp.pad(cards.astype(jnp.float32),
                           ((0, 0), (0, INPUT_SIZE - CARD_ENCODING_SIZE)))
    x = jnp.stack([deck.astype(jnp.float32), rank.astype(jnp.float32),
                   removed.astype(jnp.float32), cards_padded], axis=0)   # (4,B,128)

    slab = pl.pallas_call(
        clash_royale_kernel,
        out_shape=jax.ShapeDtypeStruct((NUM_OUT, b, INPUT_SIZE), jnp.float32),
        grid=(b // BATCH_TILE,),
        in_specs=[
            pl.BlockSpec((NUM_FIELDS, BATCH_TILE, INPUT_SIZE), lambda i: (0, i, 0)),
            pl.BlockSpec((NR_OF_BUCKETS, INPUT_SIZE), lambda i: (0, 0)),   # revisited, no re-DMA
            pl.BlockSpec((PARAM_ROWS, INPUT_SIZE), lambda i: (0, 0)),      # revisited, no re-DMA
        ],
        out_specs=pl.BlockSpec((NUM_OUT, BATCH_TILE, INPUT_SIZE), lambda i: (0, i, 0)),
        compiler_params=pltpu.CompilerParams(dimension_semantics=("parallel",)),
    )(x, bucket.astype(jnp.float32), params_packed)

    drd = slab[O_DRD, :, :ENCODER_DIM]
    cd = slab[O_CD, :, :ENCODER_DIM]
    bkt = slab[O_BKT, :, 0].astype(jnp.int32)
    return drd, cd, bkt


# --------------------- deterministic parameter init ----------------------------
def init_params(key):
    ks = jax.random.split(key, 7)

    def uni(k, shape, fan_in):
        bound = 1.0 / jnp.sqrt(jnp.float32(fan_in))
        return jax.random.uniform(k, shape, jnp.float32, -bound, bound)

    # PyTorch Linear weight is (out, in); store transposed as (in, out).
    return dict(
        wenc_t=uni(ks[0], (INPUT_SIZE, ENCODER_DIM), INPUT_SIZE),
        w1_t=uni(ks[1], (CARD_ENCODING_SIZE, DENSE_NEURONS), CARD_ENCODING_SIZE),
        b1=uni(ks[2], (1, DENSE_NEURONS), CARD_ENCODING_SIZE),
        w2_t=uni(ks[3], (DENSE_NEURONS, DENSE_NEURONS), DENSE_NEURONS),
        b2=uni(ks[4], (1, DENSE_NEURONS), DENSE_NEURONS),
        wc_t=uni(ks[5], (DENSE_NEURONS, INPUT_SIZE), DENSE_NEURONS),
        bc=uni(ks[6], (1, INPUT_SIZE), DENSE_NEURONS),
    )


# ------------------------- plain-JAX reference ---------------------------------
def reference_forward(p, deck, rank, cards, removed, bucket):
    enc = lambda v: v @ p["wenc_t"]
    deck_enc = enc(deck)                                        # (B,32)
    drd = deck_enc - enc(rank)
    h = jnp.maximum(cards @ p["w1_t"] + p["b1"], 0.0)
    h = jnp.maximum(h @ p["w2_t"] + p["b2"], 0.0)
    probs = jax.nn.softmax(h @ p["wc_t"] + p["bc"], axis=-1)
    cd = enc(probs) - enc(removed)
    diff = enc(bucket)[None, :, :] - deck_enc[:, None, :]       # (B,16,32)
    dist = jnp.sqrt(jnp.sum(diff * diff, axis=-1))              # (B,16)
    return drd, cd, jnp.argmax(dist, axis=-1).astype(jnp.int32)


# ---------------------------------- main ----------------------------------------
if __name__ == "__main__":
    key = jax.random.PRNGKey(0)
    kp, kd, kr, kc = jax.random.split(key, 4)
    params = init_params(kp)
    params_packed = pack_params(params)

    B = 2 * BATCH_TILE                                  # 16 independent forwards, grid=(2,)
    deck_keys = jax.random.split(kd, B)
    deck_idx = jnp.stack([
        jax.random.choice(k, NR_OF_CARDS, (NR_OF_CARDS_PER_DECK,), replace=False)
        for k in deck_keys])
    rows = jnp.arange(B)
    deck = jnp.zeros((B, INPUT_SIZE), jnp.float32).at[rows[:, None], deck_idx].set(1.0)
    rank_ids = jax.random.randint(kr, (B,), 0, NR_OF_BUCKETS)
    rank = jnp.zeros((B, INPUT_SIZE), jnp.float32).at[rows, NR_OF_CARDS + rank_ids].set(1.0)
    cards_agg = jax.random.normal(kc, (B, CARD_ENCODING_SIZE), jnp.float32)
    removed = jnp.zeros((B, INPUT_SIZE), jnp.float32).at[rows, deck_idx[:, 0]].set(1.0)
    bucket_one_hot = jnp.zeros((NR_OF_BUCKETS, INPUT_SIZE), jnp.float32).at[
        jnp.arange(NR_OF_BUCKETS), NR_OF_CARDS + jnp.arange(NR_OF_BUCKETS)].set(1.0)

    drd, cd, bkt = clash_royale_forward(
        params_packed, deck, rank, cards_agg, removed, bucket_one_hot)
    jax.block_until_ready((drd, cd, bkt))

    r_drd, r_cd, r_bkt = reference_forward(
        params, deck, rank, cards_agg, removed, bucket_one_hot)
    assert jnp.allclose(drd, r_drd, rtol=1e-3, atol=1e-3)
    assert jnp.allclose(cd, r_cd, rtol=1e-3, atol=1e-3)
    assert bool(jnp.all(bkt == r_bkt))

    print("KERNEL_OK")
</pallas_src>

<mosaic_0001>
module attributes {stable_mosaic.version = 11 : i64} {
  func.func @clash_royale_kernel(%arg0: i32, %arg1: memref<4x8x128xf32, #tpu.memory_space<vmem>>, %arg2: memref<16x128xf32, #tpu.memory_space<vmem>>, %arg3: memref<352x128xf32, #tpu.memory_space<vmem>>, %arg4: memref<3x8x128xf32, #tpu.memory_space<vmem>>) attributes {dimension_semantics = [#tpu.dimension_semantics<parallel>], iteration_bounds = array<i64: 2>, scalar_prefetch = 0 : i64, scratch_operands = 0 : i64, tpu.core_type = #tpu.core_type<tc>, window_params = [{transform_indices = @transform_0, window_bounds = array<i64: 4, 8, 128>}, {pipeline_mode = #tpu.pipeline_mode<synchronous>, transform_indices = @transform_1, window_bounds = array<i64: 16, 128>}, {pipeline_mode = #tpu.pipeline_mode<synchronous>, transform_indices = @transform_2, window_bounds = array<i64: 352, 128>}, {transform_indices = @transform_3, window_bounds = array<i64: 3, 8, 128>}]} {
    %c288 = arith.constant 288 : index
    %c0 = arith.constant 0 : index
    %0 = vector.load %arg3[%c288, %c0] : memref<352x128xf32, #tpu.memory_space<vmem>>, vector<8x128xf32>
    %c3 = arith.constant 3 : index
    %c0_0 = arith.constant 0 : index
    %c0_1 = arith.constant 0 : index
    %1 = vector.load %arg1[%c3, %c0_0, %c0_1] : memref<4x8x128xf32, #tpu.memory_space<vmem>>, vector<1x8x128xf32>
    %2 = vector.shape_cast %1 : vector<1x8x128xf32> to vector<8x128xf32>
    %c128 = arith.constant 128 : index
    %c0_2 = arith.constant 0 : index
    %3 = vector.load %arg3[%c128, %c0_2] : memref<352x128xf32, #tpu.memory_space<vmem>>, vector<128x128xf32>
    %cst = arith.constant dense<0.000000e+00> : vector<8x128xf32>
    %4 = tpu.matmul %2, %3, %cst {dimension_numbers = #tpu.dot_dimension_numbers<[1], [0], [0], [1], [0, 0, 1, 1], [], []>} : vector<8x128xf32>, vector<128x128xf32>, vector<8x128xf32> -> vector<8x128xf32>
    %5 = vector.extract_strided_slice %0 {offsets = [0, 0], sizes = [1, 128], strides = [1, 1]} : vector<8x128xf32> to vector<1x128xf32>
    %6 = vector.broadcast %5 : vector<1x128xf32> to vector<8x128xf32>
    %7 = arith.addf %4, %6 : vector<8x128xf32>
    %cst_3 = arith.constant 0.000000e+00 : f32
    %8 = vector.broadcast %cst_3 : f32 to vector<8x128xf32>
    %9 = arith.maximumf %7, %8 : vector<8x128xf32>
    %c160 = arith.constant 160 : index
    %c0_4 = arith.constant 0 : index
    %10 = vector.load %arg3[%c160, %c0_4] : memref<352x128xf32, #tpu.memory_space<vmem>>, vector<128x128xf32>
    %cst_5 = arith.constant dense<0.000000e+00> : vector<8x128xf32>
    %11 = tpu.matmul %9, %10, %cst_5 {dimension_numbers = #tpu.dot_dimension_numbers<[1], [0], [0], [1], [0, 0, 1, 1], [], []>} : vector<8x128xf32>, vector<128x128xf32>, vector<8x128xf32> -> vector<8x128xf32>
    %12 = vector.extract_strided_slice %0 {offsets = [1, 0], sizes = [1, 128], strides = [1, 1]} : vector<8x128xf32> to vector<1x128xf32>
    %13 = vector.broadcast %12 : vector<1x128xf32> to vector<8x128xf32>
    %14 = arith.addf %11, %13 : vector<8x128xf32>
    %cst_6 = arith.constant 0.000000e+00 : f32
    %15 = vector.broadcast %cst_6 : f32 to vector<8x128xf32>
    %16 = arith.maximumf %14, %15 : vector<8x128xf32>
    %c224 = arith.constant 224 : index
    %c0_7 = arith.constant 0 : index
    %17 = vector.load %arg3[%c224, %c0_7] : memref<352x128xf32, #tpu.memory_space<vmem>>, vector<128x128xf32>
    %cst_8 = arith.constant dense<0.000000e+00> : vector<8x128xf32>
    %18 = tpu.matmul %16, %17, %cst_8 {dimension_numbers = #tpu.dot_dimension_numbers<[1], [0], [0], [1], [0, 0, 1, 1], [], []>} : vector<8x128xf32>, vector<128x128xf32>, vector<8x128xf32> -> vector<8x128xf32>
    %19 = vector.extract_strided_slice %0 {offsets = [2, 0], sizes = [1, 128], strides = [1, 1]} : vector<8x128xf32> to vector<1x128xf32>
    %20 = vector.broadcast %19 : vector<1x128xf32> to vector<8x128xf32>
    %21 = arith.addf %18, %20 : vector<8x128xf32>
    %cst_9 = arith.constant dense<0xFF800000> : vector<8xf32>
    %22 = vector.multi_reduction <maximumf>, %21, %cst_9 [1] : vector<8x128xf32> to vector<8xf32>
    %23 = vector.shape_cast %22 : vector<8xf32> to vector<8x1xf32>
    %24 = vector.broadcast %23 : vector<8x1xf32> to vector<8x128xf32>
    %25 = arith.subf %21, %24 : vector<8x128xf32>
    %26 = math.exp %25 : vector<8x128xf32>
    %cst_10 = arith.constant dense<0.000000e+00> : vector<8xf32>
    %27 = vector.multi_reduction <add>, %26, %cst_10 [1] : vector<8x128xf32> to vector<8xf32>
    %28 = vector.shape_cast %27 : vector<8xf32> to vector<8x1xf32>
    %29 = vector.broadcast %28 : vector<8x1xf32> to vector<8x128xf32>
    %30 = arith.divf %26, %29 : vector<8x128xf32>
    %c0_11 = arith.constant 0 : index
    %c0_12 = arith.constant 0 : index
    %c0_13 = arith.constant 0 : index
    %31 = vector.load %arg1[%c0_11, %c0_12, %c0_13] : memref<4x8x128xf32, #tpu.memory_space<vmem>>, vector<1x8x128xf32>
    %32 = vector.shape_cast %31 : vector<1x8x128xf32> to vector<8x128xf32>
    %c1 = arith.constant 1 : index
    %c0_14 = arith.constant 0 : index
    %c0_15 = arith.constant 0 : index
    %33 = vector.load %arg1[%c1, %c0_14, %c0_15] : memref<4x8x128xf32, #tpu.memory_space<vmem>>, vector<1x8x128xf32>
    %34 = vector.shape_cast %33 : vector<1x8x128xf32> to vector<8x128xf32>
    %c2 = arith.constant 2 : index
    %c0_16 = arith.constant 0 : index
    %c0_17 = arith.constant 0 : index
    %35 = vector.load %arg1[%c2, %c0_16, %c0_17] : memref<4x8x128xf32, #tpu.memory_space<vmem>>, vector<1x8x128xf32>
    %36 = vector.shape_cast %35 : vector<1x8x128xf32> to vector<8x128xf32>
    %c0_18 = arith.constant 0 : index
    %c0_19 = arith.constant 0 : index
    %37 = vector.load %arg2[%c0_18, %c0_19] : memref<16x128xf32, #tpu.memory_space<vmem>>, vector<16x128xf32>
    %38 = tpu.concatenate %32, %34, %36, %30, %37 in 0 : vector<8x128xf32>, vector<8x128xf32>, vector<8x128xf32>, vector<8x128xf32>, vector<16x128xf32> -> vector<48x128xf32>
    %c0_20 = arith.constant 0 : index
    %c0_21 = arith.constant 0 : index
    %39 = vector.load %arg3[%c0_20, %c0_21] : memref<352x128xf32, #tpu.memory_space<vmem>>, vector<128x128xf32>
    %cst_22 = arith.constant dense<0.000000e+00> : vector<48x128xf32>
    %40 = tpu.matmul %38, %39, %cst_22 {dimension_numbers = #tpu.dot_dimension_numbers<[1], [0], [0], [1], [0, 0, 1, 1], [], []>} : vector<48x128xf32>, vector<128x128xf32>, vector<48x128xf32> -> vector<48x128xf32>
    %41 = vector.extract_strided_slice %40 {offsets = [0, 0], sizes = [8, 128], strides = [1, 1]} : vector<48x128xf32> to vector<8x128xf32>
    %42 = vector.extract_strided_slice %40 {offsets = [8, 0], sizes = [8, 128], strides = [1, 1]} : vector<48x128xf32> to vector<8x128xf32>
    %43 = vector.extract_strided_slice %40 {offsets = [16, 0], sizes = [8, 128], strides = [1, 1]} : vector<48x128xf32> to vector<8x128xf32>
    %44 = vector.extract_strided_slice %40 {offsets = [24, 0], sizes = [8, 128], strides = [1, 1]} : vector<48x128xf32> to vector<8x128xf32>
    %45 = vector.extract_strided_slice %40 {offsets = [32, 0], sizes = [16, 128], strides = [1, 1]} : vector<48x128xf32> to vector<16x128xf32>
    %46 = arith.subf %41, %42 : vector<8x128xf32>
    %c0_23 = arith.constant 0 : index
    %c0_24 = arith.constant 0 : index
    %c0_25 = arith.constant 0 : index
    %47 = vector.load %arg4[%c0_23, %c0_24, %c0_25] : memref<3x8x128xf32, #tpu.memory_space<vmem>>, vector<1x8x128xf32>
    %48 = vector.shape_cast %47 : vector<1x8x128xf32> to vector<8x128xf32>
    %49 = vector.shape_cast %46 : vector<8x128xf32> to vector<1x8x128xf32>
    tpu.vector_store %arg4[%c0_23, %c0_24, %c0_25], %49 {strides = array<i32>} : memref<3x8x128xf32, #tpu.memory_space<vmem>>, vector<1x8x128xf32>,
    %50 = arith.subf %44, %43 : vector<8x128xf32>
    %c1_26 = arith.constant 1 : index
    %c0_27 = arith.constant 0 : index
    %c0_28 = arith.constant 0 : index
    %51 = vector.load %arg4[%c1_26, %c0_27, %c0_28] : memref<3x8x128xf32, #tpu.memory_space<vmem>>, vector<1x8x128xf32>
    %52 = vector.shape_cast %51 : vector<1x8x128xf32> to vector<8x128xf32>
    %53 = vector.shape_cast %50 : vector<8x128xf32> to vector<1x8x128xf32>
    tpu.vector_store %arg4[%c1_26, %c0_27, %c0_28], %53 {strides = array<i32>} : memref<3x8x128xf32, #tpu.memory_space<vmem>>, vector<1x8x128xf32>,
    %54 = vector.shape_cast %45 : vector<16x128xf32> to vector<1x16x128xf32>
    %55 = vector.shape_cast %41 : vector<8x128xf32> to vector<8x1x128xf32>
    %56 = vector.broadcast %54 : vector<1x16x128xf32> to vector<8x16x128xf32>
    %57 = vector.broadcast %55 : vector<8x1x128xf32> to vector<8x16x128xf32>
    %58 = arith.subf %56, %57 : vector<8x16x128xf32>
    %59 = arith.mulf %58, %58 : vector<8x16x128xf32>
    %cst_29 = arith.constant dense<0.000000e+00> : vector<8x16xf32>
    %60 = vector.multi_reduction <add>, %59, %cst_29 [2] : vector<8x16x128xf32> to vector<8x16xf32>
    %cst_30 = arith.constant dense<0xFF800000> : vector<8xf32>
    %61 = vector.multi_reduction <maximumf>, %60, %cst_30 [1] : vector<8x16xf32> to vector<8xf32>
    %62 = vector.shape_cast %61 : vector<8xf32> to vector<8x1xf32>
    %63 = tpu.iota {dimensions = array<i32: 1>} : vector<8x16xi32>
    %64 = vector.broadcast %62 : vector<8x1xf32> to vector<8x16xf32>
    %65 = arith.cmpf oge, %60, %64 : vector<8x16xf32>
    %c16_i32 = arith.constant 16 : i32
    %66 = vector.broadcast %c16_i32 : i32 to vector<8x16xi32>
    %67 = arith.select %65, %63, %66 : vector<8x16xi1>, vector<8x16xi32>
    %cst_31 = arith.constant dense<2147483647> : vector<8xi32>
    %68 = vector.multi_reduction <minsi>, %67, %cst_31 [1] : vector<8x16xi32> to vector<8xi32>
    %69 = vector.shape_cast %68 : vector<8xi32> to vector<8x1xi32>
    %70 = arith.sitofp %69 : vector<8x1xi32> to vector<8x1xf32>
    %71 = vector.shape_cast %70 : vector<8x1xf32> to vector<8x1xf32>
    %72 = vector.broadcast %71 : vector<8x1xf32> to vector<8x128xf32>
    %c2_32 = arith.constant 2 : index
    %c0_33 = arith.constant 0 : index
    %c0_34 = arith.constant 0 : index
    %73 = vector.load %arg4[%c2_32, %c0_33, %c0_34] : memref<3x8x128xf32, #tpu.memory_space<vmem>>, vector<1x8x128xf32>
    %74 = vector.shape_cast %73 : vector<1x8x128xf32> to vector<8x128xf32>
    %75 = vector.shape_cast %72 : vector<8x128xf32> to vector<1x8x128xf32>
    tpu.vector_store %arg4[%c2_32, %c0_33, %c0_34], %75 {strides = array<i32>} : memref<3x8x128xf32, #tpu.memory_space<vmem>>, vector<1x8x128xf32>,
    return
  }
  func.func @transform_0(%arg0: i32) -> (i32, i32, i32) {
    %c0_i32 = arith.constant 0 : i32
    %c0_i32_0 = arith.constant 0 : i32
    %c0_i32_1 = arith.constant 0 : i32
    return %c0_i32, %arg0, %c0_i32_0 : i32, i32, i32
  }
  func.func @transform_1(%arg0: i32) -> (i32, i32) {
    %c0_i32 = arith.constant 0 : i32
    %c0_i32_0 = arith.constant 0 : i32
    %c0_i32_1 = arith.constant 0 : i32
    return %c0_i32, %c0_i32_0 : i32, i32
  }
  func.func @transform_2(%arg0: i32) -> (i32, i32) {
    %c0_i32 = arith.constant 0 : i32
    %c0_i32_0 = arith.constant 0 : i32
    %c0_i32_1 = arith.constant 0 : i32
    return %c0_i32, %c0_i32_0 : i32, i32
  }
  func.func @transform_3(%arg0: i32) -> (i32, i32, i32) {
    %c0_i32 = arith.constant 0 : i32
    %c0_i32_0 = arith.constant 0 : i32
    %c0_i32_1 = arith.constant 0 : i32
    return %c0_i32, %arg0, %c0_i32_0 : i32, i32, i32
  }
}

</mosaic_0001>

<llo_original>
// kernel: clash_royale_forward.1
$region0: #{clash_royale_forward.1}
  #allocation0 [shape = 'u32[]', space=smem, size = 0x4, offset = 0x4, fixed_abs, tag = 'smem constant byte address 0x4 - core index']
  #allocation1 [shape = 'u32[144,128]{1,0:T(1,128)}', space=vmem, size = 0x12000, scoped, tag = 'internal scratch']
  %s0 = inlined_call_operand.vmem [shape: f32[4,16,128], index: 0, kind: input, shape index: {}]
  %s1 = inlined_call_operand.vmem [shape: f32[16,128], index: 1, kind: input, shape index: {}]
  %s2 = inlined_call_operand.hbm [shape: f32[352,128], index: 2, kind: input, shape index: {}]
  %s3 = inlined_call_operand.vmem [shape: f32[3,16,128], index: 3, kind: output, shape index: {}]
  %s4 = sld [smem:[#allocation0]]
  $region121: #{clash_royale_forward.1} parent=0
    _
  %s6 = ssub.s32 1, %s4
  %s7 = scalar_select 0, %s6, %s4
  $region1: #{clash_royale_forward.1} parent=0
    #allocation2 [shape = 'u8[32768]{0}', space=vmem, size = 0x8000, scoped, tag = 'input window, operand 0']
    #allocation3 [shape = 'u8[180224]{0}', space=vmem, size = 0x2c000, scoped, tag = 'input window, operand 2, single buffered']
    #allocation4 [shape = 's32[2]{0}', space=sflag, size = 0x8, scoped, tag = 'scoped memory for clash_royale_forward.1']
    #allocation5 [shape = 'u8[24576]{0}', space=vmem, size = 0x6000, scoped, tag = 'output window, operand 0']
    %8 = vsyncpa [#allocation4], 0
    loop: start=0, step=1, limit=4
    $region2: #{clash_royale_forward.1} parent=1 // loop_pre_header
      _
    $region3: #{clash_royale_forward.1} parent=1 // loop_header
      %s10 = sphi 0, %s14
      %p11 = scmp.ge.s32.totalorder %s10, 4
      %s20 = sphi 0, %s22
      %s23 = sphi 0, %s20
      %s24 = sphi 0, %s23
      %s40 = sphi 0, %s24
      %s44 = sphi 0, %s44
      %s46 = sphi 0, %s44
      %s47 = sphi 0, %s46
      %s61 = sphi 0, %s47
      %s65 = sphi 0, %s65
      %s67 = sphi 0, %s65
      %s68 = sphi 0, %s67
      %s82 = sphi 0, %s68
      %s88 = sphi 0, %s90
      %s91 = sphi 0, %s88
      %s92 = sphi 0, %s91
      %s108 = sphi 0, %s92
    $region4: #{clash_royale_forward.1} parent=1 // loop_header_branch
      %13 = sbr.rel (%p11) target = $region8
    $region5: #{clash_royale_forward.1} parent=1 // loop_body
      %s15 = ssub.s32 %s10, 1
      %s16 = ssub.s32 %s10, 2
      %s17 = sadd.s32 %s10, 1
      %s18 = ssub.s32 %s10, %s17
      %p19 = scmp.eq.s32.totalorder %s18, 0
      %s21 = sadd.s32 %s20, 1
      %s22 = scalar_select %p19, %s20, %s21
      %p25 = pneg %p19
      %p26 = scmp.eq.s32.totalorder %s10, 1
      %p27 = por %p25, %p26
      %p28 = scmp.ne.s32.totalorder %s20, %s23
      %p29 = scmp.eq.s32.totalorder %s10, 0
      %p30 = por %p28, %p29
      %p31 = scmp.ne.s32.totalorder %s20, %s23
      %p32 = scmp.eq.s32.totalorder %s15, 1
      %p33 = por %p31, %p32
      %p34 = scmp.ne.s32.totalorder %s23, %s24
      %p35 = scmp.eq.s32.totalorder %s15, 0
      %p36 = por %p34, %p35
      %p37 = scmp.ne.s32.totalorder %s23, %s24
      %p38 = scmp.eq.s32.totalorder %s16, 1
      %p39 = por %p37, %p38
      %p41 = scmp.ne.s32.totalorder %s24, %s40
      %p42 = scmp.eq.s32.totalorder %s16, 0
      %p43 = por %p41, %p42
      %s45 = sadd.s32 %s44, 1
      %p48 = scmp.eq.s32.totalorder %s10, 1
      %p49 = scmp.ne.s32.totalorder %s44, %s46
      %p50 = scmp.eq.s32.totalorder %s10, 0
      %p51 = por %p49, %p50
      %p52 = scmp.ne.s32.totalorder %s44, %s46
      %p53 = scmp.eq.s32.totalorder %s15, 1
      %p54 = por %p52, %p53
      %p55 = scmp.ne.s32.totalorder %s46, %s47
      %p56 = scmp.eq.s32.totalorder %s15, 0
      %p57 = por %p55, %p56
      %p58 = scmp.ne.s32.totalorder %s46, %s47
      %p59 = scmp.eq.s32.totalorder %s16, 1
      %p60 = por %p58, %p59
      %p62 = scmp.ne.s32.totalorder %s47, %s61
      %p63 = scmp.eq.s32.totalorder %s16, 0
      %p64 = por %p62, %p63
      %s66 = sadd.s32 %s65, 1
      %p69 = scmp.eq.s32.totalorder %s10, 1
      %p70 = scmp.ne.s32.totalorder %s65, %s67
      %p71 = scmp.eq.s32.totalorder %s10, 0
      %p72 = por %p70, %p71
      %p73 = scmp.ne.s32.totalorder %s65, %s67
      %p74 = scmp.eq.s32.totalorder %s15, 1
      %p75 = por %p73, %p74
      %p76 = scmp.ne.s32.totalorder %s67, %s68
      %p77 = scmp.eq.s32.totalorder %s15, 0
      %p78 = por %p76, %p77
      %p79 = scmp.ne.s32.totalorder %s67, %s68
      %p80 = scmp.eq.s32.totalorder %s16, 1
      %p81 = por %p79, %p80
      %p83 = scmp.ne.s32.totalorder %s68, %s82
      %p84 = scmp.eq.s32.totalorder %s16, 0
      %p85 = por %p83, %p84
      %s86 = ssub.s32 %s10, %s17
      %p87 = scmp.eq.s32.totalorder %s86, 0
      %s89 = sadd.s32 %s88, 1
      %s90 = scalar_select %p87, %s88, %s89
      %p93 = pneg %p87
      %p94 = scmp.eq.s32.totalorder %s10, 1
      %p95 = por %p93, %p94
      %p96 = scmp.ne.s32.totalorder %s88, %s91
      %p97 = scmp.eq.s32.totalorder %s10, 0
      %p98 = por %p96, %p97
      %p99 = scmp.ne.s32.totalorder %s88, %s91
      %p100 = scmp.eq.s32.totalorder %s15, 1
      %p101 = por %p99, %p100
      %p102 = scmp.ne.s32.totalorder %s91, %s92
      %p103 = scmp.eq.s32.totalorder %s15, 0
      %p104 = por %p102, %p103
      %p105 = scmp.ne.s32.totalorder %s91, %s92
      %p106 = scmp.eq.s32.totalorder %s16, 1
      %p107 = por %p105, %p106
      %p109 = scmp.ne.s32.totalorder %s92, %s108
      %p110 = scmp.eq.s32.totalorder %s16, 0
      %p111 = por %p109, %p110
      %p112 = scmp.le.s32.totalorder 1, %s10
      %p113 = scmp.lt.s32.totalorder %s10, 3
      %p114 = pnand %p112, %p113
      %p115 = pneg %p114
      // Predicated region
      $region9: #{clash_royale_forward.1} parent=5 // pred_check
        _
      $region10: #{clash_royale_forward.1} parent=5 // pred_check_branch
        %117 = sbr.rel (%p114) target = $region12
      $region11: #{clash_royale_forward.1} parent=5 // pred_region
        %s118 = ssub.s32 %s10, 1
        // Predicated region
        $region13: #{clash_royale_forward.1} parent=11 // pred_check
          %p119 = pneg %p57
        $region14: #{clash_royale_forward.1} parent=11 // pred_check_branch
          %121 = sbr.rel (%p119) target = $region16
        $region15: #{clash_royale_forward.1} parent=11 // pred_region
          _
        $region16: #{clash_royale_forward.1} parent=11 // pred_fallthru
          _
        // Predicated region
        $region17: #{clash_royale_forward.1} parent=11 // pred_check
          %p122 = pneg %p78
        $region18: #{clash_royale_forward.1} parent=11 // pred_check_branch
          %124 = sbr.rel (%p122) target = $region20
        $region19: #{clash_royale_forward.1} parent=11 // pred_region
          %s126 = ssub.s32 5632, 5632
          %127 = vsyncadd [#allocation4], %s126
          %s128 = sshll.u32 [#allocation3], 4
          %s129 = int_to_ptr.vmem [resolvable:$true] %s128
          %134 = dma.hbm_to_vmem [thread:$0]  %s2, 5632, %s129, [#allocation4], 128, 128, 8
        $region20: #{clash_royale_forward.1} parent=11 // pred_fallthru
          _
      $region12: #{clash_royale_forward.1} parent=5 // pred_fallthru
        _
      %p135 = scmp.lt.s32.totalorder %s10, 2
      // Predicated region
      $region21: #{clash_royale_forward.1} parent=5 // pred_check
        %p136 = pneg %p135
      $region22: #{clash_royale_forward.1} parent=5 // pred_check_branch
        %138 = sbr.rel (%p136) target = $region24
      $region23: #{clash_royale_forward.1} parent=5 // pred_region
        // Predicated region
        $region25: #{clash_royale_forward.1} parent=23 // pred_check
          %p139 = pneg %p30
        $region26: #{clash_royale_forward.1} parent=23 // pred_check_branch
          %141 = sbr.rel (%p139) target = $region28
        $region27: #{clash_royale_forward.1} parent=23 // pred_region
          %s142 = sand.u32 %s20, 1
          %s143 = sand.u32 %s20, 1
          %s144 = smul.addr %s143, 32
          %s145 = scalar_lea.vmem [#allocation2], %s144
          %s146 = smul.addr %s10, 8
          %s147 = scalar_lea.vmem %s0, %s146
          // Predicated region
          $region29: #{clash_royale_forward.1} parent=27 // pred_check
            _
          $region30: #{clash_royale_forward.1} parent=27 // pred_check_branch
            %149 = sbr.rel (0) target = $region32
          $region31: #{clash_royale_forward.1} parent=27 // pred_region
            // Predicated region
            $region33: #{clash_royale_forward.1} parent=31 // pred_check
              _
            $region34: #{clash_royale_forward.1} parent=31 // pred_check_branch
              %151 = sbr.rel (0) target = $region36
            $region35: #{clash_royale_forward.1} parent=31 // pred_region
              // Predicated region
              $region48: #{clash_royale_forward.1} parent=35 // pred_check
                _
              $region49: #{clash_royale_forward.1} parent=35 // pred_check_branch
                %172 = sbr.rel (0) target = $region51
              $region50: #{clash_royale_forward.1} parent=35 // pred_region
                loop: start=0, step=1, limit=1
                $region52: #{clash_royale_forward.1} parent=50 // loop_pre_header
                  _
                $region53: #{clash_royale_forward.1} parent=50 // loop_header
                  %s174 = sphi 0, %s178
                  %p175 = scmp.ge.s32.totalorder %s174, 1
                  %s179 = sphi %s147, %s147
                  %s180 = sphi %s145, %s145
                $region54: #{clash_royale_forward.1} parent=50 // loop_header_branch
                  %177 = sbr.rel (%p175) target = $region58
                $region55: #{clash_royale_forward.1} parent=50 // loop_body
                  %v181 = vld [vmem:[%s179] sm:$0xff]
                  %182 = vst [vmem:[%s180] sm:$0xff] %v181
                  %v183 = vld [vmem:[%s179 + $0x10] sm:$0xff]
                  %184 = vst [vmem:[%s180 + $0x8] sm:$0xff] %v183
                  %v185 = vld [vmem:[%s179 + $0x20] sm:$0xff]
                  %186 = vst [vmem:[%s180 + $0x10] sm:$0xff] %v185
                  %v187 = vld [vmem:[%s179 + $0x30] sm:$0xff]
                  %188 = vst [vmem:[%s180 + $0x18] sm:$0xff] %v187
                $region56: #{clash_royale_forward.1} parent=50 // loop_footer
                  %s178 = sadd.s32 1, %s174
                $region57: #{clash_royale_forward.1} parent=50 // loop_footer_branch
                  %173 = sbr.rel target = $region53
                $region58: #{clash_royale_forward.1} parent=50 // loop_exit
                  _
              $region51: #{clash_royale_forward.1} parent=35 // pred_fallthru
                _
              // Predicated region
              $region59: #{clash_royale_forward.1} parent=35 // pred_check
                _
              $region60: #{clash_royale_forward.1} parent=35 // pred_check_branch
                %190 = sbr.rel target = $region62
              $region61: #{clash_royale_forward.1} parent=35 // pred_region
                _
              $region62: #{clash_royale_forward.1} parent=35 // pred_fallthru
                _
            $region36: #{clash_royale_forward.1} parent=31 // pred_fallthru
              _
            // Predicated region
            $region37: #{clash_royale_forward.1} parent=31 // pred_check
              _
            $region38: #{clash_royale_forward.1} parent=31 // pred_check_branch
              %153 = sbr.rel target = $region40
            $region39: #{clash_royale_forward.1} parent=31 // pred_region
              loop: start=0, step=1, limit=1
              $region41: #{clash_royale_forward.1} parent=39 // loop_pre_header
                _
              $region42: #{clash_royale_forward.1} parent=39 // loop_header
                %s156 = sphi 0, %s160
                %p157 = scmp.ge.s32.totalorder %s156, 1
                %s161 = sphi %s147, %s147
                %s162 = sphi %s145, %s145
              $region43: #{clash_royale_forward.1} parent=39 // loop_header_branch
                %159 = sbr.rel (%p157) target = $region47
              $region44: #{clash_royale_forward.1} parent=39 // loop_body
                %v163 = vld [vmem:[%s161] sm:$0xff]
                %164 = vst [vmem:[%s162] sm:$0xff] %v163
                %v165 = vld [vmem:[%s161 + $0x10] sm:$0xff]
                %166 = vst [vmem:[%s162 + $0x8] sm:$0xff] %v165
                %v167 = vld [vmem:[%s161 + $0x20] sm:$0xff]
                %168 = vst [vmem:[%s162 + $0x10] sm:$0xff] %v167
                %v169 = vld [vmem:[%s161 + $0x30] sm:$0xff]
                %170 = vst [vmem:[%s162 + $0x18] sm:$0xff] %v169
              $region45: #{clash_royale_forward.1} parent=39 // loop_footer
                %s160 = sadd.s32 1, %s156
              $region46: #{clash_royale_forward.1} parent=39 // loop_footer_branch
                %155 = sbr.rel target = $region42
              $region47: #{clash_royale_forward.1} parent=39 // loop_exit
                _
            $region40: #{clash_royale_forward.1} parent=31 // pred_fallthru
              _
          $region32: #{clash_royale_forward.1} parent=27 // pred_fallthru
            _
          %191 = vnop
        $region28: #{clash_royale_forward.1} parent=23 // pred_fallthru
          _
      $region24: #{clash_royale_forward.1} parent=5 // pred_fallthru
        _
      %p192 = scmp.le.s32.totalorder 1, %s10
      %p193 = scmp.lt.s32.totalorder %s10, 3
      %p194 = pnand %p192, %p193
      %p195 = pneg %p194
      // Predicated region
      $region63: #{clash_royale_forward.1} parent=5 // pred_check
        _
      $region64: #{clash_royale_forward.1} parent=5 // pred_check_branch
        %197 = sbr.rel (%p194) target = $region66
      $region65: #{clash_royale_forward.1} parent=5 // pred_region
        %s198 = ssub.s32 %s10, 1
        %s199 = sand.u32 %s23, 1
        %s200 = sand.u32 %s23, 1
        %s201 = smul.addr %s200, 32
        %s202 = scalar_lea.vmem [#allocation2], %s201
        // Predicated region
        $region67: #{clash_royale_forward.1} parent=65 // pred_check
          %p203 = pneg %p36
        $region68: #{clash_royale_forward.1} parent=65 // pred_check_branch
          %205 = sbr.rel (%p203) target = $region70
        $region69: #{clash_royale_forward.1} parent=65 // pred_region
          _
        $region70: #{clash_royale_forward.1} parent=65 // pred_fallthru
          _
        // Predicated region
        $region71: #{clash_royale_forward.1} parent=65 // pred_check
          %p206 = pneg %p78
        $region72: #{clash_royale_forward.1} parent=65 // pred_check_branch
          %208 = sbr.rel (%p206) target = $region74
        $region73: #{clash_royale_forward.1} parent=65 // pred_region
          %209 = dma.done [#allocation4], 5632
        $region74: #{clash_royale_forward.1} parent=65 // pred_fallthru
          _
        %s210 = sand.u32 %s23, 1
        %s211 = sand.u32 %s23, 1
        %s212 = smul.addr %s211, 32
        %s213 = scalar_lea.vmem [#allocation2], %s212
        %p214 = pneg %p36
        %p215 = pneg %p33
        %p216 = pneg %p57
        %p217 = pneg %p54
        %p218 = pneg %p78
        %p219 = pneg %p75
        %p220 = pneg %p104
        %p221 = pneg %p101
        %s222 = sand.u32 %s91, 1
        %s223 = sand.u32 %s91, 1
        %s224 = smul.addr %s223, 24
        %s225 = scalar_lea.vmem [#allocation5], %s224
        %v226 = vld [vmem:[#allocation3 + $0x120] sm:$0xff]
        %s227 = scalar_lea.vmem %s202, 24 [#allocation2]
        %v228 = vld [vmem:[%s227] sm:$0xff]
        %v229 = vld [vmem:[#allocation3 + $0x80] sm:$0xff]
        %v230 = vld [vmem:[#allocation3 + $0x88] sm:$0xff]
        %v231 = vld [vmem:[#allocation3 + $0x90] sm:$0xff]
        %v232 = vld [vmem:[#allocation3 + $0x98] sm:$0xff]
        %v233 = vld [vmem:[#allocation3 + $0xa0] sm:$0xff]
        %v234 = vld [vmem:[#allocation3 + $0xa8] sm:$0xff]
        %v235 = vld [vmem:[#allocation3 + $0xb0] sm:$0xff]
        %v236 = vld [vmem:[#allocation3 + $0xb8] sm:$0xff]
        %v237 = vld [vmem:[#allocation3 + $0xc0] sm:$0xff]
        %v238 = vld [vmem:[#allocation3 + $0xc8] sm:$0xff]
        %v239 = vld [vmem:[#allocation3 + $0xd0] sm:$0xff]
        %v240 = vld [vmem:[#allocation3 + $0xd8] sm:$0xff]
        %v241 = vld [vmem:[#allocation3 + $0xe0] sm:$0xff]
        %v242 = vld [vmem:[#allocation3 + $0xe8] sm:$0xff]
        %v243 = vld [vmem:[#allocation3 + $0xf0] sm:$0xff]
        %v244 = vld [vmem:[#allocation3 + $0xf8] sm:$0xff]
        %v245 = vlaneseq
        %v246 = vshrl.u32 %v245, 7
        %v247 = vsub.s32 0, %v246
        %v248 = vrot.slane %v226, %v247
        %249 = vmatprep.subr.mxu0 0.0
        %250 = vmatpush1.msra.mxu0 %v229
        %251 = vmatprep.subr.mxu0 0.0
        %252 = vmatpush1.msra.mxu0 %v230
        %253 = vmatprep.subr.mxu0 0.0
        %254 = vmatpush1.msra.mxu0 %v231
        %255 = vmatprep.subr.mxu0 0.0
        %256 = vmatpush1.msra.mxu0 %v232
        %257 = vmatprep.subr.mxu0 0.0
        %258 = vmatpush1.msra.mxu0 %v233
        %259 = vmatprep.subr.mxu0 0.0
        %260 = vmatpush1.msra.mxu0 %v234
        %261 = vmatprep.subr.mxu0 0.0
        %262 = vmatpush1.msra.mxu0 %v235
        %263 = vmatprep.subr.mxu0 0.0
        %264 = vmatpush1.msra.mxu0 %v236
        %265 = vmatprep.subr.mxu0 0.0
        %266 = vmatpush1.msra.mxu0 %v237
        %267 = vmatprep.subr.mxu0 0.0
        %268 = vmatpush1.msra.mxu0 %v238
        %269 = vmatprep.subr.mxu0 0.0
        %270 = vmatpush1.msra.mxu0 %v239
        %271 = vmatprep.subr.mxu0 0.0
        %272 = vmatpush1.msra.mxu0 %v240
        %273 = vmatprep.subr.mxu0 0.0
        %274 = vmatpush1.msra.mxu0 %v241
        %275 = vmatprep.subr.mxu0 0.0
        %276 = vmatpush1.msra.mxu0 %v242
        %277 = vmatprep.subr.mxu0 0.0
        %278 = vmatpush1.msra.mxu0 %v243
        %279 = vmatprep.subr.mxu0 0.0
        %280 = vmatpush1.msra.mxu0 %v244
        %281 = vmatprep.subr.mxu0 0.0
        %282 = vmatpush1.msra.mxu0 0.0
        %283 = vmatprep.subr.mxu0 0.0
        %284 = vmatpush1.msra.mxu0 0.0
        %285 = vmatprep.subr.mxu0 0.0
        %286 = vmatpush1.msra.mxu0 0.0
        %287 = vmatprep.subr.mxu0 0.0
        %288 = vmatpush1.msra.mxu0 0.0
        %289 = vmatprep.subr.mxu0 0.0
        %290 = vmatpush1.msra.mxu0 0.0
        %291 = vmatprep.subr.mxu0 0.0
        %292 = vmatpush1.msra.mxu0 0.0
        %293 = vmatprep.subr.mxu0 0.0
        %294 = vmatpush1.msra.mxu0 0.0
        %295 = vmatprep.subr.mxu0 0.0
        %296 = vmatpush1.msra.mxu0 0.0
        %297 = vmatprep.subr.mxu0 0.0
        %298 = vmatpush1.msra.mxu0 0.0
        %299 = vmatprep.subr.mxu0 0.0
        %300 = vmatpush1.msra.mxu0 0.0
        %301 = vmatprep.subr.mxu0 0.0
        %302 = vmatpush1.msra.mxu0 0.0
        %303 = vmatprep.subr.mxu0 0.0
        %304 = vmatpush1.msra.mxu0 0.0
        %305 = vmatprep.subr.mxu0 0.0
        %306 = vmatpush1.msra.mxu0 0.0
        %307 = vmatprep.subr.mxu0 0.0
        %308 = vmatpush1.msra.mxu0 0.0
        %309 = vmatprep.subr.mxu0 0.0
        %310 = vmatpush1.msra.mxu0 0.0
        %311 = vmatprep.subr.mxu0 0.0
        %312 = vmatpush1.msra.mxu0 0.0
        %313 = vmatprep.mubr.f32.mxu0 0.0
        %314 = vmatmul.mubr.f32.gmra.mrb[0].mxu0 %v228
        %v315 = vpop.f32.mrb[0].mxu0
        %v316 = vadd.f32 %v248, %v315
        %v317 = vpop.f32.mrb[0].mxu0
        %318 = vdwg.mxu0
        %v319 = vmax.f32 %v316, 0.0
        %v320 = vld [vmem:[#allocation3 + $0xa0] sm:$0xff]
        %v321 = vld [vmem:[#allocation3 + $0xa8] sm:$0xff]
        %v322 = vld [vmem:[#allocation3 + $0xb0] sm:$0xff]
        %v323 = vld [vmem:[#allocation3 + $0xb8] sm:$0xff]
        %v324 = vld [vmem:[#allocation3 + $0xc0] sm:$0xff]
        %v325 = vld [vmem:[#allocation3 + $0xc8] sm:$0xff]
        %v326 = vld [vmem:[#allocation3 + $0xd0] sm:$0xff]
        %v327 = vld [vmem:[#allocation3 + $0xd8] sm:$0xff]
        %v328 = vld [vmem:[#allocation3 + $0xe0] sm:$0xff]
        %v329 = vld [vmem:[#allocation3 + $0xe8] sm:$0xff]
        %v330 = vld [vmem:[#allocation3 + $0xf0] sm:$0xff]
        %v331 = vld [vmem:[#allocation3 + $0xf8] sm:$0xff]
        %v332 = vld [vmem:[#allocation3 + $0x100] sm:$0xff]
        %v333 = vld [vmem:[#allocation3 + $0x108] sm:$0xff]
        %v334 = vld [vmem:[#allocation3 + $0x110] sm:$0xff]
        %v335 = vld [vmem:[#allocation3 + $0x118] sm:$0xff]
        %v336 = vlaneseq
        %v337 = vshrl.u32 %v336, 7
        %v338 = vsub.s32 1, %v337
        %v339 = vrot.slane %v226, %v338
        %340 = vmatprep.subr.mxu0 0.0
        %341 = vmatpush1.msra.mxu0 %v320
        %342 = vmatprep.subr.mxu0 0.0
        %343 = vmatpush1.msra.mxu0 %v321
        %344 = vmatprep.subr.mxu0 0.0
        %345 = vmatpush1.msra.mxu0 %v322
        %346 = vmatprep.subr.mxu0 0.0
        %347 = vmatpush1.msra.mxu0 %v323
        %348 = vmatprep.subr.mxu0 0.0
        %349 = vmatpush1.msra.mxu0 %v324
        %350 = vmatprep.subr.mxu0 0.0
        %351 = vmatpush1.msra.mxu0 %v325
        %352 = vmatprep.subr.mxu0 0.0
        %353 = vmatpush1.msra.mxu0 %v326
        %354 = vmatprep.subr.mxu0 0.0
        %355 = vmatpush1.msra.mxu0 %v327
        %356 = vmatprep.subr.mxu0 0.0
        %357 = vmatpush1.msra.mxu0 %v328
        %358 = vmatprep.subr.mxu0 0.0
        %359 = vmatpush1.msra.mxu0 %v329
        %360 = vmatprep.subr.mxu0 0.0
        %361 = vmatpush1.msra.mxu0 %v330
        %362 = vmatprep.subr.mxu0 0.0
        %363 = vmatpush1.msra.mxu0 %v331
        %364 = vmatprep.subr.mxu0 0.0
        %365 = vmatpush1.msra.mxu0 %v332
        %366 = vmatprep.subr.mxu0 0.0
        %367 = vmatpush1.msra.mxu0 %v333
        %368 = vmatprep.subr.mxu0 0.0
        %369 = vmatpush1.msra.mxu0 %v334
        %370 = vmatprep.subr.mxu0 0.0
        %371 = vmatpush1.msra.mxu0 %v335
        %372 = vmatprep.subr.mxu0 0.0
        %373 = vmatpush1.msra.mxu0 0.0
        %374 = vmatprep.subr.mxu0 0.0
        %375 = vmatpush1.msra.mxu0 0.0
        %376 = vmatprep.subr.mxu0 0.0
        %377 = vmatpush1.msra.mxu0 0.0
        %378 = vmatprep.subr.mxu0 0.0
        %379 = vmatpush1.msra.mxu0 0.0
        %380 = vmatprep.subr.mxu0 0.0
        %381 = vmatpush1.msra.mxu0 0.0
        %382 = vmatprep.subr.mxu0 0.0
        %383 = vmatpush1.msra.mxu0 0.0
        %384 = vmatprep.subr.mxu0 0.0
        %385 = vmatpush1.msra.mxu0 0.0
        %386 = vmatprep.subr.mxu0 0.0
        %387 = vmatpush1.msra.mxu0 0.0
        %388 = vmatprep.subr.mxu0 0.0
        %389 = vmatpush1.msra.mxu0 0.0
        %390 = vmatprep.subr.mxu0 0.0
        %391 = vmatpush1.msra.mxu0 0.0
        %392 = vmatprep.subr.mxu0 0.0
        %393 = vmatpush1.msra.mxu0 0.0
        %394 = vmatprep.subr.mxu0 0.0
        %395 = vmatpush1.msra.mxu0 0.0
        %396 = vmatprep.subr.mxu0 0.0
        %397 = vmatpush1.msra.mxu0 0.0
        %398 = vmatprep.subr.mxu0 0.0
        %399 = vmatpush1.msra.mxu0 0.0
        %400 = vmatprep.subr.mxu0 0.0
        %401 = vmatpush1.msra.mxu0 0.0
        %402 = vmatprep.subr.mxu0 0.0
        %403 = vmatpush1.msra.mxu0 0.0
        %404 = vmatprep.mubr.f32.mxu0 0.0
        %405 = vmatmul.mubr.f32.gmra.mrb[0].mxu0 %v319
        %v406 = vpop.f32.mrb[0].mxu0
        %v407 = vadd.f32 %v339, %v406
        %v408 = vpop.f32.mrb[0].mxu0
        %409 = vdwg.mxu0
        %v410 = vmax.f32 %v407, 0.0
        %v411 = vld [vmem:[#allocation3 + $0xe0] sm:$0xff]
        %v412 = vld [vmem:[#allocation3 + $0xe8] sm:$0xff]
        %v413 = vld [vmem:[#allocation3 + $0xf0] sm:$0xff]
        %v414 = vld [vmem:[#allocation3 + $0xf8] sm:$0xff]
        %v415 = vld [vmem:[#allocation3 + $0x100] sm:$0xff]
        %v416 = vld [vmem:[#allocation3 + $0x108] sm:$0xff]
        %v417 = vld [vmem:[#allocation3 + $0x110] sm:$0xff]
        %v418 = vld [vmem:[#allocation3 + $0x118] sm:$0xff]
        %v419 = vld [vmem:[#allocation3 + $0x120] sm:$0xff]
        %v420 = vld [vmem:[#allocation3 + $0x128] sm:$0xff]
        %v421 = vld [vmem:[#allocation3 + $0x130] sm:$0xff]
        %v422 = vld [vmem:[#allocation3 + $0x138] sm:$0xff]
        %v423 = vld [vmem:[#allocation3 + $0x140] sm:$0xff]
        %v424 = vld [vmem:[#allocation3 + $0x148] sm:$0xff]
        %v425 = vld [vmem:[#allocation3 + $0x150] sm:$0xff]
        %v426 = vld [vmem:[#allocation3 + $0x158] sm:$0xff]
        %v427 = vlaneseq
        %v428 = vshrl.u32 %v427, 7
        %v429 = vsub.s32 2, %v428
        %v430 = vrot.slane %v226, %v429
        %431 = vmatprep.subr.mxu0 0.0
        %432 = vmatpush1.msra.mxu0 %v411
        %433 = vmatprep.subr.mxu0 0.0
        %434 = vmatpush1.msra.mxu0 %v412
        %435 = vmatprep.subr.mxu0 0.0
        %436 = vmatpush1.msra.mxu0 %v413
        %437 = vmatprep.subr.mxu0 0.0
        %438 = vmatpush1.msra.mxu0 %v414
        %439 = vmatprep.subr.mxu0 0.0
        %440 = vmatpush1.msra.mxu0 %v415
        %441 = vmatprep.subr.mxu0 0.0
        %442 = vmatpush1.msra.mxu0 %v416
        %443 = vmatprep.subr.mxu0 0.0
        %444 = vmatpush1.msra.mxu0 %v417
        %445 = vmatprep.subr.mxu0 0.0
        %446 = vmatpush1.msra.mxu0 %v418
        %447 = vmatprep.subr.mxu0 0.0
        %448 = vmatpush1.msra.mxu0 %v419
        %449 = vmatprep.subr.mxu0 0.0
        %450 = vmatpush1.msra.mxu0 %v420
        %451 = vmatprep.subr.mxu0 0.0
        %452 = vmatpush1.msra.mxu0 %v421
        %453 = vmatprep.subr.mxu0 0.0
        %454 = vmatpush1.msra.mxu0 %v422
        %455 = vmatprep.subr.mxu0 0.0
        %456 = vmatpush1.msra.mxu0 %v423
        %457 = vmatprep.subr.mxu0 0.0
        %458 = vmatpush1.msra.mxu0 %v424
        %459 = vmatprep.subr.mxu0 0.0
        %460 = vmatpush1.msra.mxu0 %v425
        %461 = vmatprep.subr.mxu0 0.0
        %462 = vmatpush1.msra.mxu0 %v426
        %463 = vmatprep.subr.mxu0 0.0
        %464 = vmatpush1.msra.mxu0 0.0
        %465 = vmatprep.subr.mxu0 0.0
        %466 = vmatpush1.msra.mxu0 0.0
        %467 = vmatprep.subr.mxu0 0.0
        %468 = vmatpush1.msra.mxu0 0.0
        %469 = vmatprep.subr.mxu0 0.0
        %470 = vmatpush1.msra.mxu0 0.0
        %471 = vmatprep.subr.mxu0 0.0
        %472 = vmatpush1.msra.mxu0 0.0
        %473 = vmatprep.subr.mxu0 0.0
        %474 = vmatpush1.msra.mxu0 0.0
        %475 = vmatprep.subr.mxu0 0.0
        %476 = vmatpush1.msra.mxu0 0.0
        %477 = vmatprep.subr.mxu0 0.0
        %478 = vmatpush1.msra.mxu0 0.0
        %479 = vmatprep.subr.mxu0 0.0
        %480 = vmatpush1.msra.mxu0 0.0
        %481 = vmatprep.subr.mxu0 0.0
        %482 = vmatpush1.msra.mxu0 0.0
        %483 = vmatprep.subr.mxu0 0.0
        %484 = vmatpush1.msra.mxu0 0.0
        %485 = vmatprep.subr.mxu0 0.0
        %486 = vmatpush1.msra.mxu0 0.0
        %487 = vmatprep.subr.mxu0 0.0
        %488 = vmatpush1.msra.mxu0 0.0
        %489 = vmatprep.subr.mxu0 0.0
        %490 = vmatpush1.msra.mxu0 0.0
        %491 = vmatprep.subr.mxu0 0.0
        %492 = vmatpush1.msra.mxu0 0.0
        %493 = vmatprep.subr.mxu0 0.0
        %494 = vmatpush1.msra.mxu0 0.0
        %495 = vmatprep.mubr.f32.mxu0 0.0
        %496 = vmatmul.mubr.f32.gmra.mrb[0].mxu0 %v410
        %v497 = vpop.f32.mrb[0].mxu0
        %v498 = vadd.f32 %v430, %v497
        %v499 = vpop.f32.mrb[0].mxu0
        %500 = vdwg.mxu0
        %501 = vmax.xlane.f32.xlu0 %v498
        %v502 = vpop.xlane.xlu0 %501
        %v503 = vsub.f32 %v498, %v502
        %v504 = vmul.f32 %v503, 1.442695
        %v505 = vpow.pop %v504
        %506 = vadd.xlane.f32.xlu0 %v505
        %v507 = vpop.xlane.xlu0 %506
        %v508 = vrcp.pop %v507
        %v509 = vmul.f32 %v505, %v508
        %v510 = vld [vmem:[%s202] sm:$0xff]
        %s511 = scalar_lea.vmem %s202, 8 [#allocation2]
        %v512 = vld [vmem:[%s511] sm:$0xff]
        %s513 = scalar_lea.vmem %s202, 16 [#allocation2]
        %v514 = vld [vmem:[%s513] sm:$0xff]
        %v515 = vld [vmem:[%s1] sm:$0xff]
        %v516 = vld [vmem:[%s1 + $0x8] sm:$0xff]
        %v517 = vld [vmem:[#allocation3] sm:$0xff]
        %v518 = vld [vmem:[#allocation3 + $0x8] sm:$0xff]
        %v519 = vld [vmem:[#allocation3 + $0x10] sm:$0xff]
        %v520 = vld [vmem:[#allocation3 + $0x18] sm:$0xff]
        %v521 = vld [vmem:[#allocation3 + $0x20] sm:$0xff]
        %v522 = vld [vmem:[#allocation3 + $0x28] sm:$0xff]
        %v523 = vld [vmem:[#allocation3 + $0x30] sm:$0xff]
        %v524 = vld [vmem:[#allocation3 + $0x38] sm:$0xff]
        %v525 = vld [vmem:[#allocation3 + $0x40] sm:$0xff]
        %v526 = vld [vmem:[#allocation3 + $0x48] sm:$0xff]
        %v527 = vld [vmem:[#allocation3 + $0x50] sm:$0xff]
        %v528 = vld [vmem:[#allocation3 + $0x58] sm:$0xff]
        %v529 = vld [vmem:[#allocation3 + $0x60] sm:$0xff]
        %v530 = vld [vmem:[#allocation3 + $0x68] sm:$0xff]
        %v531 = vld [vmem:[#allocation3 + $0x70] sm:$0xff]
        %v532 = vld [vmem:[#allocation3 + $0x78] sm:$0xff]
        %533 = vmatprep.subr.mxu0 0.0
        %534 = vmatpush1.msra.mxu0 %v517
        %535 = vmatprep.subr.mxu0 0.0
        %536 = vmatpush1.msra.mxu0 %v518
        %537 = vmatprep.subr.mxu0 0.0
        %538 = vmatpush1.msra.mxu0 %v519
        %539 = vmatprep.subr.mxu0 0.0
        %540 = vmatpush1.msra.mxu0 %v520
        %541 = vmatprep.subr.mxu0 0.0
        %542 = vmatpush1.msra.mxu0 %v521
        %543 = vmatprep.subr.mxu0 0.0
        %544 = vmatpush1.msra.mxu0 %v522
        %545 = vmatprep.subr.mxu0 0.0
        %546 = vmatpush1.msra.mxu0 %v523
        %547 = vmatprep.subr.mxu0 0.0
        %548 = vmatpush1.msra.mxu0 %v524
        %549 = vmatprep.subr.mxu0 0.0
        %550 = vmatpush1.msra.mxu0 %v525
        %551 = vmatprep.subr.mxu0 0.0
        %552 = vmatpush1.msra.mxu0 %v526
        %553 = vmatprep.subr.mxu0 0.0
        %554 = vmatpush1.msra.mxu0 %v527
        %555 = vmatprep.subr.mxu0 0.0
        %556 = vmatpush1.msra.mxu0 %v528
        %557 = vmatprep.subr.mxu0 0.0
        %558 = vmatpush1.msra.mxu0 %v529
        %559 = vmatprep.subr.mxu0 0.0
        %560 = vmatpush1.msra.mxu0 %v530
        %561 = vmatprep.subr.mxu0 0.0
        %562 = vmatpush1.msra.mxu0 %v531
        %563 = vmatprep.subr.mxu0 0.0
        %564 = vmatpush1.msra.mxu0 %v532
        %565 = vmatprep.subr.mxu0 0.0
        %566 = vmatpush1.msra.mxu0 0.0
        %567 = vmatprep.subr.mxu0 0.0
        %568 = vmatpush1.msra.mxu0 0.0
        %569 = vmatprep.subr.mxu0 0.0
        %570 = vmatpush1.msra.mxu0 0.0
        %571 = vmatprep.subr.mxu0 0.0
        %572 = vmatpush1.msra.mxu0 0.0
        %573 = vmatprep.subr.mxu0 0.0
        %574 = vmatpush1.msra.mxu0 0.0
        %575 = vmatprep.subr.mxu0 0.0
        %576 = vmatpush1.msra.mxu0 0.0
        %577 = vmatprep.subr.mxu0 0.0
        %578 = vmatpush1.msra.mxu0 0.0
        %579 = vmatprep.subr.mxu0 0.0
        %580 = vmatpush1.msra.mxu0 0.0
        %581 = vmatprep.subr.mxu0 0.0
        %582 = vmatpush1.msra.mxu0 0.0
        %583 = vmatprep.subr.mxu0 0.0
        %584 = vmatpush1.msra.mxu0 0.0
        %585 = vmatprep.subr.mxu0 0.0
        %586 = vmatpush1.msra.mxu0 0.0
        %587 = vmatprep.subr.mxu0 0.0
        %588 = vmatpush1.msra.mxu0 0.0
        %589 = vmatprep.subr.mxu0 0.0
        %590 = vmatpush1.msra.mxu0 0.0
        %591 = vmatprep.subr.mxu0 0.0
        %592 = vmatpush1.msra.mxu0 0.0
        %593 = vmatprep.subr.mxu0 0.0
        %594 = vmatpush1.msra.mxu0 0.0
        %595 = vmatprep.subr.mxu0 0.0
        %596 = vmatpush1.msra.mxu0 0.0
        %597 = vmatprep.mubr.f32.mxu0 0.0
        %598 = vmatmul.mubr.f32.gmra.mrb[0].mxu0 %v510
        %v599 = vpop.f32.mrb[0].mxu0
        %v600 = vadd.f32 0.0, %v599
        %v601 = vpop.f32.mrb[0].mxu0
        %602 = vmatprep.mubr.f32.mxu0 0.0
        %603 = vmatmul.mubr.f32.gmra.mrb[0].mxu0 %v512
        %v604 = vpop.f32.mrb[0].mxu0
        %v605 = vadd.f32 0.0, %v604
        %v606 = vpop.f32.mrb[0].mxu0
        %607 = vmatprep.mubr.f32.mxu0 0.0
        %608 = vmatmul.mubr.f32.gmra.mrb[0].mxu0 %v514
        %v609 = vpop.f32.mrb[0].mxu0
        %v610 = vadd.f32 0.0, %v609
        %v611 = vpop.f32.mrb[0].mxu0
        %612 = vmatprep.mubr.f32.mxu0 0.0
        %613 = vmatmul.mubr.f32.gmra.mrb[0].mxu0 %v509
        %v614 = vpop.f32.mrb[0].mxu0
        %v615 = vadd.f32 0.0, %v614
        %v616 = vpop.f32.mrb[0].mxu0
        %617 = vmatprep.mubr.f32.mxu0 0.0
        %618 = vmatmul.mubr.f32.gmra.mrb[0].mxu0 %v515
        %v619 = vpop.f32.mrb[0].mxu0
        %v620 = vadd.f32 0.0, %v619
        %v621 = vpop.f32.mrb[0].mxu0
        %622 = vmatprep.mubr.f32.mxu0 0.0
        %623 = vmatmul.mubr.f32.gmra.mrb[0].mxu0 %v516
        %v624 = vpop.f32.mrb[0].mxu0
        %v625 = vadd.f32 0.0, %v624
        %v626 = vpop.f32.mrb[0].mxu0
        %627 = vdwg.mxu0
        %v628 = vsub.f32 %v600, %v605
        %629 = vst [vmem:[%s225] sm:$0xff] %v628
        %v630 = vsub.f32 %v615, %v610
        %s631 = scalar_lea.vmem %s225, 8 [#allocation5]
        %632 = vst [vmem:[%s631] sm:$0xff] %v630
        %v634 = vcombine.high %v600, %v600
        %v636 = vunpack.c.l.s4 1966171168
        %v637 = vunpack.c.0.s8 %v636
        %v638 = vlaneseq
        %v639 = vshrl.u32 %v638, 7
        %v640 = vsub.s32 %v637, %v639
        %v641 = vrot.slane %v600, %v640
        %v643 = vunpack.c.l.s4 1966171168
        %v644 = vunpack.c.0.s8 %v643
        %v645 = vlaneseq
        %v646 = vshrl.u32 %v645, 7
        %v647 = vsub.s32 %v644, %v646
        %v648 = vrot.slane %v634, %v647
        %v649 = vcombine.high %v641, %v641
        %v650 = vcombine.high %v648, %v648
        %v652 = vunpack.c.l.s4 1966171168
        %v653 = vunpack.c.0.s8 %v652
        %v654 = vlaneseq
        %v655 = vshrl.u32 %v654, 7
        %v656 = vsub.s32 %v653, %v655
        %v657 = vrot.slane %v641, %v656
        %v659 = vunpack.c.l.s4 1966171168
        %v660 = vunpack.c.0.s8 %v659
        %v661 = vlaneseq
        %v662 = vshrl.u32 %v661, 7
        %v663 = vsub.s32 %v660, %v662
        %v664 = vrot.slane %v648, %v663
        %v666 = vunpack.c.l.s4 1966171168
        %v667 = vunpack.c.0.s8 %v666
        %v668 = vlaneseq
        %v669 = vshrl.u32 %v668, 7
        %v670 = vsub.s32 %v667, %v669
        %v671 = vrot.slane %v649, %v670
        %v673 = vunpack.c.l.s4 1966171168
        %v674 = vunpack.c.0.s8 %v673
        %v675 = vlaneseq
        %v676 = vshrl.u32 %v675, 7
        %v677 = vsub.s32 %v674, %v676
        %v678 = vrot.slane %v650, %v677
        %v679 = vcombine.high %v657, %v657
        %v680 = vcombine.high %v664, %v664
        %v681 = vcombine.high %v671, %v671
        %v682 = vcombine.high %v678, %v678
        %v683 = vlaneseq
        %v684 = vshrl.u32 %v683, 7
        %v685 = vsub.s32 0, %v684
        %v686 = vrot.slane %v657, %v685
        %v687 = vlaneseq
        %v688 = vshrl.u32 %v687, 7
        %v689 = vsub.s32 0, %v688
        %v690 = vrot.slane %v671, %v689
        %v691 = vlaneseq
        %v692 = vshrl.u32 %v691, 7
        %v693 = vsub.s32 0, %v692
        %v694 = vrot.slane %v679, %v693
        %v695 = vlaneseq
        %v696 = vshrl.u32 %v695, 7
        %v697 = vsub.s32 0, %v696
        %v698 = vrot.slane %v681, %v697
        %v699 = vlaneseq
        %v700 = vshrl.u32 %v699, 7
        %v701 = vsub.s32 0, %v700
        %v702 = vrot.slane %v664, %v701
        %v703 = vlaneseq
        %v704 = vshrl.u32 %v703, 7
        %v705 = vsub.s32 0, %v704
        %v706 = vrot.slane %v678, %v705
        %v707 = vlaneseq
        %v708 = vshrl.u32 %v707, 7
        %v709 = vsub.s32 0, %v708
        %v710 = vrot.slane %v680, %v709
        %v711 = vlaneseq
        %v712 = vshrl.u32 %v711, 7
        %v713 = vsub.s32 0, %v712
        %v714 = vrot.slane %v682, %v713
        %v723 = vsub.f32 %v620, %v686
        %v724 = vsub.f32 %v625, %v686
        %v725 = vsub.f32 %v620, %v690
        %v726 = vsub.f32 %v625, %v690
        %v727 = vsub.f32 %v620, %v694
        %v728 = vsub.f32 %v625, %v694
        %v729 = vsub.f32 %v620, %v698
        %v730 = vsub.f32 %v625, %v698
        %v731 = vsub.f32 %v620, %v702
        %v732 = vsub.f32 %v625, %v702
        %v733 = vsub.f32 %v620, %v706
        %v734 = vsub.f32 %v625, %v706
        %v735 = vsub.f32 %v620, %v710
        %v736 = vsub.f32 %v625, %v710
        %v737 = vsub.f32 %v620, %v714
        %v738 = vsub.f32 %v625, %v714
        %v739 = vmul.f32 %v723, %v723
        %v740 = vmul.f32 %v724, %v724
        %v741 = vmul.f32 %v725, %v725
        %v742 = vmul.f32 %v726, %v726
        %v743 = vmul.f32 %v727, %v727
        %v744 = vmul.f32 %v728, %v728
        %v745 = vmul.f32 %v729, %v729
        %v746 = vmul.f32 %v730, %v730
        %v747 = vmul.f32 %v731, %v731
        %v748 = vmul.f32 %v732, %v732
        %v749 = vmul.f32 %v733, %v733
        %v750 = vmul.f32 %v734, %v734
        %v751 = vmul.f32 %v735, %v735
        %v752 = vmul.f32 %v736, %v736
        %v753 = vmul.f32 %v737, %v737
        %v754 = vmul.f32 %v738, %v738
        %755 = vadd.xlane.f32.xlu0 %v739
        %v756 = vpop.xlane.xlu0 %755
        %757 = vadd.xlane.f32.xlu0 %v740
        %v758 = vpop.xlane.xlu0 %757
        %759 = vadd.xlane.f32.xlu0 %v741
        %v760 = vpop.xlane.xlu0 %759
        %761 = vadd.xlane.f32.xlu0 %v742
        %v762 = vpop.xlane.xlu0 %761
        %763 = vadd.xlane.f32.xlu0 %v743
        %v764 = vpop.xlane.xlu0 %763
        %765 = vadd.xlane.f32.xlu0 %v744
        %v766 = vpop.xlane.xlu0 %765
        %767 = vadd.xlane.f32.xlu0 %v745
        %v768 = vpop.xlane.xlu0 %767
        %769 = vadd.xlane.f32.xlu0 %v746
        %v770 = vpop.xlane.xlu0 %769
        %771 = vadd.xlane.f32.xlu0 %v747
        %v772 = vpop.xlane.xlu0 %771
        %773 = vadd.xlane.f32.xlu0 %v748
        %v774 = vpop.xlane.xlu0 %773
        %775 = vadd.xlane.f32.xlu0 %v749
        %v776 = vpop.xlane.xlu0 %775
        %777 = vadd.xlane.f32.xlu0 %v750
        %v778 = vpop.xlane.xlu0 %777
        %779 = vadd.xlane.f32.xlu0 %v751
        %v780 = vpop.xlane.xlu0 %779
        %781 = vadd.xlane.f32.xlu0 %v752
        %v782 = vpop.xlane.xlu0 %781
        %783 = vadd.xlane.f32.xlu0 %v753
        %v784 = vpop.xlane.xlu0 %783
        %785 = vadd.xlane.f32.xlu0 %v754
        %v786 = vpop.xlane.xlu0 %785
        %v803 = vlaneseq
        %v804 = vand.u32 %v803, 127
        %v805 = vlaneseq
        %v806 = vshrl.u32 %v805, 7
        %v807 = vsub.s32 %v804, %v806
        %v808 = vrot.slane %v756, %v807
        %v809 = vadd.s32 %v804, 4294967288
        %v810 = vlaneseq
        %v811 = vshrl.u32 %v810, 7
        %v812 = vsub.s32 %v809, %v811
        %v813 = vrot.slane %v758, %v812
        %vm814 = vcmask 130112
        %v815 = vsel %vm814, %v813, %v808
        %v816 = vlaneseq
        %v817 = vshrl.u32 %v816, 7
        %v818 = vsub.s32 %v804, %v817
        %v819 = vrot.slane %v760, %v818
        %v820 = vlaneseq
        %v821 = vshrl.u32 %v820, 7
        %v822 = vsub.s32 %v809, %v821
        %v823 = vrot.slane %v762, %v822
        %v824 = vsel %vm814, %v823, %v819
        %v825 = vlaneseq
        %v826 = vshrl.u32 %v825, 7
        %v827 = vsub.s32 %v804, %v826
        %v828 = vrot.slane %v764, %v827
        %v829 = vlaneseq
        %v830 = vshrl.u32 %v829, 7
        %v831 = vsub.s32 %v809, %v830
        %v832 = vrot.slane %v766, %v831
        %v833 = vsel %vm814, %v832, %v828
        %v834 = vlaneseq
        %v835 = vshrl.u32 %v834, 7
        %v836 = vsub.s32 %v804, %v835
        %v837 = vrot.slane %v768, %v836
        %v838 = vlaneseq
        %v839 = vshrl.u32 %v838, 7
        %v840 = vsub.s32 %v809, %v839
        %v841 = vrot.slane %v770, %v840
        %v842 = vsel %vm814, %v841, %v837
        %v843 = vlaneseq
        %v844 = vshrl.u32 %v843, 7
        %v845 = vsub.s32 %v804, %v844
        %v846 = vrot.slane %v772, %v845
        %v847 = vlaneseq
        %v848 = vshrl.u32 %v847, 7
        %v849 = vsub.s32 %v809, %v848
        %v850 = vrot.slane %v774, %v849
        %v851 = vsel %vm814, %v850, %v846
        %v852 = vlaneseq
        %v853 = vshrl.u32 %v852, 7
        %v854 = vsub.s32 %v804, %v853
        %v855 = vrot.slane %v776, %v854
        %v856 = vlaneseq
        %v857 = vshrl.u32 %v856, 7
        %v858 = vsub.s32 %v809, %v857
        %v859 = vrot.slane %v778, %v858
        %v860 = vsel %vm814, %v859, %v855
        %v861 = vlaneseq
        %v862 = vshrl.u32 %v861, 7
        %v863 = vsub.s32 %v804, %v862
        %v864 = vrot.slane %v780, %v863
        %v865 = vlaneseq
        %v866 = vshrl.u32 %v865, 7
        %v867 = vsub.s32 %v809, %v866
        %v868 = vrot.slane %v782, %v867
        %v869 = vsel %vm814, %v868, %v864
        %v870 = vlaneseq
        %v871 = vshrl.u32 %v870, 7
        %v872 = vsub.s32 %v804, %v871
        %v873 = vrot.slane %v784, %v872
        %v874 = vlaneseq
        %v875 = vshrl.u32 %v874, 7
        %v876 = vsub.s32 %v809, %v875
        %v877 = vrot.slane %v786, %v876
        %v878 = vsel %vm814, %v877, %v873
        %vm879 = vcmask 1041409
        %v880 = vsel %vm879, %v824, %v815
        %vm881 = vcmask 1042434
        %v882 = vsel %vm881, %v833, %v880
        %vm883 = vcmask 1043459
        %v884 = vsel %vm883, %v842, %v882
        %vm885 = vcmask 1044484
        %v886 = vsel %vm885, %v851, %v884
        %vm887 = vcmask 1045509
        %v888 = vsel %vm887, %v860, %v886
        %vm889 = vcmask 1046534
        %v890 = vsel %vm889, %v869, %v888
        %vm891 = vcmask 1047559
        %v892 = vsel %vm891, %v878, %v890
        %vm894 = vcmask 130048
        %v895 = vsel %vm894, %v892, -inf
        %896 = vmax.xlane.f32.xlu0 %v895
        %v897 = vpop.xlane.xlu0 %896
        %v899 = vlaneseq
        %v900 = vshrl.u32 %v899, 7
        %v901 = vsub.s32 0, %v900
        %v902 = vrot.slane %v897, %v901
        %v903 = vlaneseq
        %v904 = vshrl.u32 %v903, 7
        %v905 = vsub.s32 1, %v904
        %v906 = vrot.slane %v897, %v905
        %v907 = vlaneseq
        %v908 = vshrl.u32 %v907, 7
        %v909 = vsub.s32 2, %v908
        %v910 = vrot.slane %v897, %v909
        %v911 = vlaneseq
        %v912 = vshrl.u32 %v911, 7
        %v913 = vsub.s32 3, %v912
        %v914 = vrot.slane %v897, %v913
        %v915 = vlaneseq
        %v916 = vshrl.u32 %v915, 7
        %v917 = vsub.s32 4, %v916
        %v918 = vrot.slane %v897, %v917
        %v919 = vlaneseq
        %v920 = vshrl.u32 %v919, 7
        %v921 = vsub.s32 5, %v920
        %v922 = vrot.slane %v897, %v921
        %v923 = vlaneseq
        %v924 = vshrl.u32 %v923, 7
        %v925 = vsub.s32 6, %v924
        %v926 = vrot.slane %v897, %v925
        %v927 = vlaneseq
        %v928 = vshrl.u32 %v927, 7
        %v929 = vsub.s32 7, %v928
        %v930 = vrot.slane %v897, %v929
        %vm939 = vcmp.ge.f32.partialorder %v756, %v902
        %vm940 = vcmp.ge.f32.partialorder %v758, %v902
        %vm941 = vcmp.ge.f32.partialorder %v760, %v906
        %vm942 = vcmp.ge.f32.partialorder %v762, %v906
        %vm943 = vcmp.ge.f32.partialorder %v764, %v910
        %vm944 = vcmp.ge.f32.partialorder %v766, %v910
        %vm945 = vcmp.ge.f32.partialorder %v768, %v914
        %vm946 = vcmp.ge.f32.partialorder %v770, %v914
        %vm947 = vcmp.ge.f32.partialorder %v772, %v918
        %vm948 = vcmp.ge.f32.partialorder %v774, %v918
        %vm949 = vcmp.ge.f32.partialorder %v776, %v922
        %vm950 = vcmp.ge.f32.partialorder %v778, %v922
        %vm951 = vcmp.ge.f32.partialorder %v780, %v926
        %vm952 = vcmp.ge.f32.partialorder %v782, %v926
        %vm953 = vcmp.ge.f32.partialorder %v784, %v930
        %vm954 = vcmp.ge.f32.partialorder %v786, %v930
        %956 = vbcast.lane.b32.xlu0 %v804, 256
        %v957 = vpop.permute.xlu0 %956
        %s959 = sor.u32 256, 8
        %960 = vbcast.lane.b32.xlu0 %v804, %s959
        %v961 = vpop.permute.xlu0 %960
        %v962 = vsel %vm939, %v957, 16
        %v963 = vsel %vm940, %v961, 16
        %v964 = vsel %vm941, %v957, 16
        %v965 = vsel %vm942, %v961, 16
        %v966 = vsel %vm943, %v957, 16
        %v967 = vsel %vm944, %v961, 16
        %v968 = vsel %vm945, %v957, 16
        %v969 = vsel %vm946, %v961, 16
        %v970 = vsel %vm947, %v957, 16
        %v971 = vsel %vm948, %v961, 16
        %v972 = vsel %vm949, %v957, 16
        %v973 = vsel %vm950, %v961, 16
        %v974 = vsel %vm951, %v957, 16
        %v975 = vsel %vm952, %v961, 16
        %v976 = vsel %vm953, %v957, 16
        %v977 = vsel %vm954, %v961, 16
        %978 = vset.pattern.permute.xlu0 0
        %979 = vperm.xlu0 %978, %v962
        %v980 = vpop.permute.xlu0 %979
        %981 = vset.pattern.permute.xlu0 0
        %982 = vperm.xlu0 %981, %v963
        %v983 = vpop.permute.xlu0 %982
        %984 = vset.pattern.permute.xlu0 0
        %985 = vperm.xlu0 %984, %v964
        %v986 = vpop.permute.xlu0 %985
        %987 = vset.pattern.permute.xlu0 0
        %988 = vperm.xlu0 %987, %v965
        %v989 = vpop.permute.xlu0 %988
        %990 = vset.pattern.permute.xlu0 0
        %991 = vperm.xlu0 %990, %v966
        %v992 = vpop.permute.xlu0 %991
        %993 = vset.pattern.permute.xlu0 0
        %994 = vperm.xlu0 %993, %v967
        %v995 = vpop.permute.xlu0 %994
        %996 = vset.pattern.permute.xlu0 0
        %997 = vperm.xlu0 %996, %v968
        %v998 = vpop.permute.xlu0 %997
        %999 = vset.pattern.permute.xlu0 0
        %1000 = vperm.xlu0 %999, %v969
        %v1001 = vpop.permute.xlu0 %1000
        %1002 = vset.pattern.permute.xlu0 0
        %1003 = vperm.xlu0 %1002, %v970
        %v1004 = vpop.permute.xlu0 %1003
        %1005 = vset.pattern.permute.xlu0 0
        %1006 = vperm.xlu0 %1005, %v971
        %v1007 = vpop.permute.xlu0 %1006
        %1008 = vset.pattern.permute.xlu0 0
        %1009 = vperm.xlu0 %1008, %v972
        %v1010 = vpop.permute.xlu0 %1009
        %1011 = vset.pattern.permute.xlu0 0
        %1012 = vperm.xlu0 %1011, %v973
        %v1013 = vpop.permute.xlu0 %1012
        %1014 = vset.pattern.permute.xlu0 0
        %1015 = vperm.xlu0 %1014, %v974
        %v1016 = vpop.permute.xlu0 %1015
        %1017 = vset.pattern.permute.xlu0 0
        %1018 = vperm.xlu0 %1017, %v975
        %v1019 = vpop.permute.xlu0 %1018
        %1020 = vset.pattern.permute.xlu0 0
        %1021 = vperm.xlu0 %1020, %v976
        %v1022 = vpop.permute.xlu0 %1021
        %1023 = vset.pattern.permute.xlu0 0
        %1024 = vperm.xlu0 %1023, %v977
        %v1025 = vpop.permute.xlu0 %1024
        %v1026 = vlaneseq
        %v1027 = vshrl.u32 %v1026, 7
        %v1028 = vsub.s32 %v804, %v1027
        %v1029 = vrot.slane %v980, %v1028
        %v1030 = vlaneseq
        %v1031 = vshrl.u32 %v1030, 7
        %v1032 = vsub.s32 %v809, %v1031
        %v1033 = vrot.slane %v983, %v1032
        %v1034 = vsel %vm814, %v1033, %v1029
        %v1035 = vlaneseq
        %v1036 = vshrl.u32 %v1035, 7
        %v1037 = vsub.s32 %v804, %v1036
        %v1038 = vrot.slane %v986, %v1037
        %v1039 = vlaneseq
        %v1040 = vshrl.u32 %v1039, 7
        %v1041 = vsub.s32 %v809, %v1040
        %v1042 = vrot.slane %v989, %v1041
        %v1043 = vsel %vm814, %v1042, %v1038
        %v1044 = vlaneseq
        %v1045 = vshrl.u32 %v1044, 7
        %v1046 = vsub.s32 %v804, %v1045
        %v1047 = vrot.slane %v992, %v1046
        %v1048 = vlaneseq
        %v1049 = vshrl.u32 %v1048, 7
        %v1050 = vsub.s32 %v809, %v1049
        %v1051 = vrot.slane %v995, %v1050
        %v1052 = vsel %vm814, %v1051, %v1047
        %v1053 = vlaneseq
        %v1054 = vshrl.u32 %v1053, 7
        %v1055 = vsub.s32 %v804, %v1054
        %v1056 = vrot.slane %v998, %v1055
        %v1057 = vlaneseq
        %v1058 = vshrl.u32 %v1057, 7
        %v1059 = vsub.s32 %v809, %v1058
        %v1060 = vrot.slane %v1001, %v1059
        %v1061 = vsel %vm814, %v1060, %v1056
        %v1062 = vlaneseq
        %v1063 = vshrl.u32 %v1062, 7
        %v1064 = vsub.s32 %v804, %v1063
        %v1065 = vrot.slane %v1004, %v1064
        %v1066 = vlaneseq
        %v1067 = vshrl.u32 %v1066, 7
        %v1068 = vsub.s32 %v809, %v1067
        %v1069 = vrot.slane %v1007, %v1068
        %v1070 = vsel %vm814, %v1069, %v1065
        %v1071 = vlaneseq
        %v1072 = vshrl.u32 %v1071, 7
        %v1073 = vsub.s32 %v804, %v1072
        %v1074 = vrot.slane %v1010, %v1073
        %v1075 = vlaneseq
        %v1076 = vshrl.u32 %v1075, 7
        %v1077 = vsub.s32 %v809, %v1076
        %v1078 = vrot.slane %v1013, %v1077
        %v1079 = vsel %vm814, %v1078, %v1074
        %v1080 = vlaneseq
        %v1081 = vshrl.u32 %v1080, 7
        %v1082 = vsub.s32 %v804, %v1081
        %v1083 = vrot.slane %v1016, %v1082
        %v1084 = vlaneseq
        %v1085 = vshrl.u32 %v1084, 7
        %v1086 = vsub.s32 %v809, %v1085
        %v1087 = vrot.slane %v1019, %v1086
        %v1088 = vsel %vm814, %v1087, %v1083
        %v1089 = vlaneseq
        %v1090 = vshrl.u32 %v1089, 7
        %v1091 = vsub.s32 %v804, %v1090
        %v1092 = vrot.slane %v1022, %v1091
        %v1093 = vlaneseq
        %v1094 = vshrl.u32 %v1093, 7
        %v1095 = vsub.s32 %v809, %v1094
        %v1096 = vrot.slane %v1025, %v1095
        %v1097 = vsel %vm814, %v1096, %v1092
        %v1098 = vsel %vm879, %v1043, %v1034
        %v1099 = vsel %vm881, %v1052, %v1098
        %v1100 = vsel %vm883, %v1061, %v1099
        %v1101 = vsel %vm885, %v1070, %v1100
        %v1102 = vsel %vm887, %v1079, %v1101
        %v1103 = vsel %vm889, %v1088, %v1102
        %v1104 = vsel %vm891, %v1097, %v1103
        %v1105 = vsel %vm894, %v1104, 2147483647
        %v1106 = vand.u32 %v1105, 65535
        %v1107 = vshra.s32 %v1105, 16
        %v1108 = vcvt.s32.f32 %v1106
        %v1109 = vcvt.s32.f32 %v1107
        %1110 = vmin.xlane.f32.xlu0 %v1109
        %v1111 = vpop.xlane.xlu0 %1110
        %vm1112 = vcmp.eq.f32.partialorder %v1109, %v1111
        %v1113 = vsel %vm1112, %v1108, inf
        %1114 = vmin.xlane.f32.xlu0 %v1113
        %v1115 = vpop.xlane.xlu0 %1114
        %v1116 = vcvt.f32.s32 %v1115
        %v1117 = vcvt.f32.s32 %v1111
        %v1118 = vshll.u32 %v1117, 16
        %v1119 = vadd.s32 %v1118, %v1116
        %v1120 = vcvt.s32.f32 %v1119
        %s1121 = scalar_lea.vmem %s225, 16 [#allocation5]
        %1122 = vst [vmem:[%s1121] sm:$0xff] %v1120
        %s1123 = sand.u32 %s91, 1
        %s1124 = sand.u32 %s91, 1
        %s1125 = smul.addr %s1124, 24
        %s1126 = scalar_lea.vmem [#allocation5], %s1125
        // Predicated region
        $region75: #{clash_royale_forward.1} parent=65 // pred_check
          %p1127 = pneg %p101
        $region76: #{clash_royale_forward.1} parent=65 // pred_check_branch
          %1129 = sbr.rel (%p1127) target = $region78
        $region77: #{clash_royale_forward.1} parent=65 // pred_region
          %s1130 = smul.addr %s15, 8
          %s1131 = scalar_lea.vmem %s3, %s1130
          // Predicated region
          $region79: #{clash_royale_forward.1} parent=77 // pred_check
            _
          $region80: #{clash_royale_forward.1} parent=77 // pred_check_branch
            %1133 = sbr.rel (0) target = $region82
          $region81: #{clash_royale_forward.1} parent=77 // pred_region
            // Predicated region
            $region83: #{clash_royale_forward.1} parent=81 // pred_check
              _
            $region84: #{clash_royale_forward.1} parent=81 // pred_check_branch
              %1135 = sbr.rel (0) target = $region86
            $region85: #{clash_royale_forward.1} parent=81 // pred_region
              // Predicated region
              $region98: #{clash_royale_forward.1} parent=85 // pred_check
                _
              $region99: #{clash_royale_forward.1} parent=85 // pred_check_branch
                %1154 = sbr.rel (0) target = $region101
              $region100: #{clash_royale_forward.1} parent=85 // pred_region
                loop: start=0, step=1, limit=1
                $region102: #{clash_royale_forward.1} parent=100 // loop_pre_header
                  _
                $region103: #{clash_royale_forward.1} parent=100 // loop_header
                  %s1156 = sphi 0, %s1160
                  %p1157 = scmp.ge.s32.totalorder %s1156, 1
                  %s1161 = sphi %s1126, %s1126
                  %s1162 = sphi %s1131, %s1131
                $region104: #{clash_royale_forward.1} parent=100 // loop_header_branch
                  %1159 = sbr.rel (%p1157) target = $region108
                $region105: #{clash_royale_forward.1} parent=100 // loop_body
                  %v1163 = vld [vmem:[%s1161] sm:$0xff]
                  %1164 = vst [vmem:[%s1162] sm:$0xff] %v1163
                  %v1165 = vld [vmem:[%s1161 + $0x8] sm:$0xff]
                  %1166 = vst [vmem:[%s1162 + $0x10] sm:$0xff] %v1165
                  %v1167 = vld [vmem:[%s1161 + $0x10] sm:$0xff]
                  %1168 = vst [vmem:[%s1162 + $0x20] sm:$0xff] %v1167
                $region106: #{clash_royale_forward.1} parent=100 // loop_footer
                  %s1160 = sadd.s32 1, %s1156
                $region107: #{clash_royale_forward.1} parent=100 // loop_footer_branch
                  %1155 = sbr.rel target = $region103
                $region108: #{clash_royale_forward.1} parent=100 // loop_exit
                  _
              $region101: #{clash_royale_forward.1} parent=85 // pred_fallthru
                _
              // Predicated region
              $region109: #{clash_royale_forward.1} parent=85 // pred_check
                _
              $region110: #{clash_royale_forward.1} parent=85 // pred_check_branch
                %1170 = sbr.rel target = $region112
              $region111: #{clash_royale_forward.1} parent=85 // pred_region
                _
              $region112: #{clash_royale_forward.1} parent=85 // pred_fallthru
                _
            $region86: #{clash_royale_forward.1} parent=81 // pred_fallthru
              _
            // Predicated region
            $region87: #{clash_royale_forward.1} parent=81 // pred_check
              _
            $region88: #{clash_royale_forward.1} parent=81 // pred_check_branch
              %1137 = sbr.rel target = $region90
            $region89: #{clash_royale_forward.1} parent=81 // pred_region
              loop: start=0, step=1, limit=1
              $region91: #{clash_royale_forward.1} parent=89 // loop_pre_header
                _
              $region92: #{clash_royale_forward.1} parent=89 // loop_header
                %s1140 = sphi 0, %s1144
                %p1141 = scmp.ge.s32.totalorder %s1140, 1
                %s1145 = sphi %s1126, %s1126
                %s1146 = sphi %s1131, %s1131
              $region93: #{clash_royale_forward.1} parent=89 // loop_header_branch
                %1143 = sbr.rel (%p1141) target = $region97
              $region94: #{clash_royale_forward.1} parent=89 // loop_body
                %v1147 = vld [vmem:[%s1145] sm:$0xff]
                %1148 = vst [vmem:[%s1146] sm:$0xff] %v1147
                %v1149 = vld [vmem:[%s1145 + $0x8] sm:$0xff]
                %1150 = vst [vmem:[%s1146 + $0x10] sm:$0xff] %v1149
                %v1151 = vld [vmem:[%s1145 + $0x10] sm:$0xff]
                %1152 = vst [vmem:[%s1146 + $0x20] sm:$0xff] %v1151
              $region95: #{clash_royale_forward.1} parent=89 // loop_footer
                %s1144 = sadd.s32 1, %s1140
              $region96: #{clash_royale_forward.1} parent=89 // loop_footer_branch
                %1139 = sbr.rel target = $region92
              $region97: #{clash_royale_forward.1} parent=89 // loop_exit
                _
            $region90: #{clash_royale_forward.1} parent=81 // pred_fallthru
              _
          $region82: #{clash_royale_forward.1} parent=77 // pred_fallthru
            _
          %1171 = vnop
        $region78: #{clash_royale_forward.1} parent=65 // pred_fallthru
          _
      $region66: #{clash_royale_forward.1} parent=5 // pred_fallthru
        _
      %p1172 = scmp.le.s32.totalorder 2, %s10
      // Predicated region
      $region113: #{clash_royale_forward.1} parent=5 // pred_check
        %p1173 = pneg %p1172
      $region114: #{clash_royale_forward.1} parent=5 // pred_check_branch
        %1175 = sbr.rel (%p1173) target = $region116
      $region115: #{clash_royale_forward.1} parent=5 // pred_region
        %s1176 = ssub.s32 %s10, 2
        // Predicated region
        $region117: #{clash_royale_forward.1} parent=115 // pred_check
          %p1177 = pneg %p107
        $region118: #{clash_royale_forward.1} parent=115 // pred_check_branch
          %1179 = sbr.rel (%p1177) target = $region120
        $region119: #{clash_royale_forward.1} parent=115 // pred_region
          %s1180 = sand.u32 %s92, 1
          %s1181 = sand.u32 %s92, 1
          %s1182 = smul.addr %s1181, 24
          %s1183 = scalar_lea.vmem [#allocation5], %s1182
        $region120: #{clash_royale_forward.1} parent=115 // pred_fallthru
          _
      $region116: #{clash_royale_forward.1} parent=5 // pred_fallthru
        _
    $region6: #{clash_royale_forward.1} parent=1 // loop_footer
      %s14 = sadd.s32 1, %s10
    $region7: #{clash_royale_forward.1} parent=1 // loop_footer_branch
      %9 = sbr.rel target = $region3
    $region8: #{clash_royale_forward.1} parent=1 // loop_exit
      _
    %1184 = vsyncpa [#allocation4], 1
    %s1185 = scalar_lea.sflag [#allocation4], 1
    %1186 = vsyncpa %s1185, 1

</llo_original>
